<compile_context>
chip_gen: v5e
topology: v5e:2x2
jax: 0.10.0
libtpu: 0.0.40
codegen_flags: <defaults>
</compile_context>

<pallas_src>
import jax
import jax.numpy as jnp
from jax.experimental import pallas as pl
from jax.experimental.pallas import tpu as pltpu

INPUT_SIZE = 3
INPUT_PAD = 8     # feature dim zero-padded to 8 for a clean MXU contraction
HIDDEN = 64
FC1 = 64
FC2 = 32
OUT = 7
OUT_PAD = 128     # lane-dense output width; wrapper slices back to OUT
MAX_TB = 128      # batch-tile cap (MXU row width on v5e; safe everywhere)


def _round_up(v, m):
    return ((v + m - 1) // m) * m


def _net_kernel(x_ref,            # (T*TB, INPUT_PAD) f32   time-major-within-tile raw input
                wih_ref,          # (INPUT_PAD, 4H)  bf16   W_ih^T, gate order [i,f,o,g], zero-padded rows
                blstm_ref,        # (1, 4H)          f32    b_ih + b_hh, gate order [i,f,o,g]
                whh_ref,          # (H, 4H)          bf16   W_hh^T, gate order [i,f,o,g]
                w1_ref, b1_ref,   # (H, FC1) bf16, (1, FC1) f32
                w2_ref, b2_ref,   # (FC1, FC2) bf16, (1, FC2) f32
                w3_ref, b3_ref,   # (FC2, OUT_PAD) bf16, (1, OUT_PAD) f32 (zero-padded past OUT)
                out_ref,          # (TB, OUT_PAD) f32
                xg_ref):          # VMEM scratch (T*TB, 4H) f32: gate preactivations
    tb = out_ref.shape[0]
    T = x_ref.shape[0] // tb
    H = HIDDEN

    # Bulk input projection for ALL timesteps: one MXU matmul, completely off
    # the serial recurrence path. Fused LSTM bias is added in f32 (precision).
    xg_ref[...] = (jnp.dot(x_ref[...].astype(jnp.bfloat16), wih_ref[...],
                           preferred_element_type=jnp.float32)
                   + blstm_ref[...])

    whh = whh_ref[...]            # loaded once, resident across the recurrence

    def step(xg_t, h, c):
        gates = xg_t + jnp.dot(h.astype(jnp.bfloat16), whh,
                               preferred_element_type=jnp.float32)
        # sigmoid over the contiguous [i,f,o] 192-lane block: EUP exp + approx
        # reciprocal; tanh over the trailing [g] 64-lane block.
        ifo = pl.reciprocal(1.0 + jnp.exp(-gates[:, :3 * H]), approx=True)
        g_g = jnp.tanh(gates[:, 3 * H:])
        i_g = ifo[:, 0 * H:1 * H]
        f_g = ifo[:, 1 * H:2 * H]
        o_g = ifo[:, 2 * H:3 * H]
        c_new = f_g * c + i_g * g_g
        h_new = o_g * jnp.tanh(c_new)
        return h_new, c_new

    h = jnp.zeros((tb, H), jnp.float32)
    c = jnp.zeros((tb, H), jnp.float32)

    if T <= 16:
        # Short sequence: fully unrolled (scheduler visibility across steps).
        for t in range(T):
            h, c = step(xg_ref[pl.ds(t * tb, tb), :], h, c)
    else:
        # Long sequence: partially-unrolled fori_loop to bound code size and
        # vreg live ranges.
        def body(t, hc):
            hh, cc = hc
            start = pl.multiple_of(t * tb, 8)
            return step(xg_ref[pl.ds(start, tb), :], hh, cc)
        h, c = jax.lax.fori_loop(0, T, body, (h, c), unroll=4)

    # fcmodel: ReLU -> [Dropout] -> Linear -> ReLU -> [Dropout] -> Linear
    #          -> ReLU -> [Dropout] -> Linear   (Dropout = identity, eval mode)
    z = jnp.maximum(h, 0.0).astype(jnp.bfloat16)
    z = jnp.dot(z, w1_ref[...], preferred_element_type=jnp.float32) + b1_ref[...]
    z = jnp.maximum(z, 0.0).astype(jnp.bfloat16)
    z = jnp.dot(z, w2_ref[...], preferred_element_type=jnp.float32) + b2_ref[...]
    z = jnp.maximum(z, 0.0).astype(jnp.bfloat16)
    z = jnp.dot(z, w3_ref[...], preferred_element_type=jnp.float32) + b3_ref[...]
    out_ref[...] = z.astype(out_ref.dtype)       # full-width (TB, 128) store


@jax.jit
def net_forward(x, params):
    """x: (B, T, INPUT_SIZE) float32 -> (B, OUT) float32 (eval-mode forward)."""
    B, T, F = x.shape
    TB = min(MAX_TB, _round_up(B, 8))            # batch tile (sublane-aligned)
    b_pad = _round_up(B, TB)
    nb = b_pad // TB

    # Build per-batch-tile contiguous slabs, time-major within each tile:
    # row i*(T*TB) + t*TB + j  <->  (batch i*TB + j, timestep t). Feature dim
    # zero-padded 3 -> 8 so the in-kernel projection has a clean contraction.
    xp = jnp.pad(x, ((0, b_pad - B), (0, 0), (0, INPUT_PAD - F)))
    xp = (xp.reshape(nb, TB, T, INPUT_PAD)
            .transpose(0, 2, 1, 3)
            .reshape(nb * T * TB, INPUT_PAD))

    # Cost hint for XLA's scheduling of the wrapper-side pad/transpose/slice.
    flops_tile = (2 * T * TB * INPUT_PAD * 4 * HIDDEN            # input projection
                  + 2 * T * TB * HIDDEN * 4 * HIDDEN             # recurrence
                  + 2 * TB * (HIDDEN * FC1 + FC1 * FC2 + FC2 * OUT_PAD))
    trans_tile = T * TB * (4 * HIDDEN + HIDDEN)                  # gate exp/tanh + tanh(c)
    bytes_accessed = (xp.size * 4 + b_pad * OUT_PAD * 4
                      + (INPUT_PAD + HIDDEN) * 4 * HIDDEN * 2    # LSTM weights (bf16)
                      + (HIDDEN * FC1 + FC1 * FC2 + FC2 * OUT_PAD) * 2
                      + (4 * HIDDEN + FC1 + FC2 + OUT_PAD) * 4)  # biases (f32)

    # Per-tile VMEM working set; raise the scoped limit only when needed
    # (v5e default is 16 MiB). Stays well under v7x's 64 MiB physical VMEM.
    vmem_est = (2 * T * TB * 128 * 4       # x block (lane-padded), double-buffered
                + T * TB * 4 * HIDDEN * 4  # gate-preactivation scratch
                + 2 * TB * OUT_PAD * 4     # output block, double-buffered
                + 512 * 1024)              # weights + slack
    vmem_limit = None
    if vmem_est > 12 * 1024 * 1024:
        vmem_limit = int(min(60 * 1024 * 1024, vmem_est + (4 << 20)))

    out = pl.pallas_call(
        _net_kernel,
        out_shape=jax.ShapeDtypeStruct((b_pad, OUT_PAD), jnp.float32),
        grid_spec=pltpu.PrefetchScalarGridSpec(
            num_scalar_prefetch=0,
            grid=(nb,),
            in_specs=[
                pl.BlockSpec((T * TB, INPUT_PAD), lambda i: (i, 0)),
                pl.BlockSpec((INPUT_PAD, 4 * HIDDEN), lambda i: (0, 0)),
                pl.BlockSpec((1, 4 * HIDDEN), lambda i: (0, 0)),
                pl.BlockSpec((HIDDEN, 4 * HIDDEN), lambda i: (0, 0)),
                pl.BlockSpec((HIDDEN, FC1), lambda i: (0, 0)),
                pl.BlockSpec((1, FC1), lambda i: (0, 0)),
                pl.BlockSpec((FC1, FC2), lambda i: (0, 0)),
                pl.BlockSpec((1, FC2), lambda i: (0, 0)),
                pl.BlockSpec((FC2, OUT_PAD), lambda i: (0, 0)),
                pl.BlockSpec((1, OUT_PAD), lambda i: (0, 0)),
            ],
            out_specs=pl.BlockSpec((TB, OUT_PAD), lambda i: (i, 0)),
            scratch_shapes=[pltpu.VMEM((T * TB, 4 * HIDDEN), jnp.float32)],
        ),
        compiler_params=pltpu.CompilerParams(
            dimension_semantics=("parallel",),   # batch tiles shard across TCs
            vmem_limit_bytes=vmem_limit),
        cost_estimate=pl.CostEstimate(
            flops=int(nb * flops_tile),
            transcendentals=int(nb * trans_tile),
            bytes_accessed=int(bytes_accessed)),
    )(xp,
      params["wih_t"], params["b_lstm"], params["whh_t"],
      params["w1_t"], params["b1"],
      params["w2_t"], params["b2"],
      params["w3_t"], params["b3"])
    return out[:B, :OUT]


def _reorder_gates_rows(w):
    """PyTorch gate row order [i, f, g, o] -> kernel order [i, f, o, g]."""
    i, f, g, o = jnp.split(w, 4, axis=0)
    return jnp.concatenate([i, f, o, g], axis=0)


def init_params(key):
    """Deterministic PyTorch-style uniform(-1/sqrt(fan_in), 1/sqrt(fan_in)) init,
    pre-laid-out for the kernel (transposed, gate-reordered, bf16 matmul weights,
    feature-padded W_ih, lane-padded final layer)."""
    ks = jax.random.split(key, 10)
    bound_lstm = 1.0 / jnp.sqrt(HIDDEN)

    def unif(k, shape, bound):
        return jax.random.uniform(k, shape, jnp.float32, -bound, bound)

    w_ih = _reorder_gates_rows(unif(ks[0], (4 * HIDDEN, INPUT_SIZE), bound_lstm))
    w_hh = _reorder_gates_rows(unif(ks[1], (4 * HIDDEN, HIDDEN), bound_lstm))
    b_ih = _reorder_gates_rows(unif(ks[2], (4 * HIDDEN,), bound_lstm))
    b_hh = _reorder_gates_rows(unif(ks[3], (4 * HIDDEN,), bound_lstm))

    w1 = unif(ks[4], (FC1, HIDDEN), 1.0 / jnp.sqrt(HIDDEN))
    b1 = unif(ks[5], (FC1,), 1.0 / jnp.sqrt(HIDDEN))
    w2 = unif(ks[6], (FC2, FC1), 1.0 / jnp.sqrt(FC1))
    b2 = unif(ks[7], (FC2,), 1.0 / jnp.sqrt(FC1))
    w3 = unif(ks[8], (OUT, FC2), 1.0 / jnp.sqrt(FC2))
    b3 = unif(ks[9], (OUT,), 1.0 / jnp.sqrt(FC2))

    # Feature-pad W_ih (rows 3..7 zero) and lane-pad the last layer so the
    # kernel's output store is full-width.
    wih_t_pad = jnp.zeros((INPUT_PAD, 4 * HIDDEN), jnp.float32).at[:INPUT_SIZE].set(w_ih.T)
    w3_t_pad = jnp.zeros((FC2, OUT_PAD), jnp.float32).at[:, :OUT].set(w3.T)
    b3_pad = jnp.zeros((1, OUT_PAD), jnp.float32).at[0, :OUT].set(b3)

    return {
        "wih_t": wih_t_pad.astype(jnp.bfloat16),       # (8, 256)  bf16
        "b_lstm": (b_ih + b_hh)[None, :],              # (1, 256)  f32
        "whh_t": w_hh.T.astype(jnp.bfloat16),          # (64, 256) bf16
        "w1_t": w1.T.astype(jnp.bfloat16),             # (64, 64)  bf16
        "b1": b1[None, :],                             # (1, 64)   f32
        "w2_t": w2.T.astype(jnp.bfloat16),             # (64, 32)  bf16
        "b2": b2[None, :],                             # (1, 32)   f32
        "w3_t": w3_t_pad.astype(jnp.bfloat16),         # (32, 128) bf16 (zero-padded)
        "b3": b3_pad,                                  # (1, 128)  f32 (zero-padded)
    }


def _reference_forward(x, params):
    """Pure-JAX f32 eval-mode reference using the same (bf16-rounded) params."""
    wih = params["wih_t"].astype(jnp.float32)[:INPUT_SIZE]   # (3, 256)
    whh = params["whh_t"].astype(jnp.float32)                # (64, 256)
    b = params["b_lstm"][0]
    B, T, _ = x.shape
    H = HIDDEN
    h = jnp.zeros((B, H), jnp.float32)
    c = jnp.zeros((B, H), jnp.float32)
    for t in range(T):
        g = x[:, t, :] @ wih + h @ whh + b
        i = jax.nn.sigmoid(g[:, 0 * H:1 * H])
        f = jax.nn.sigmoid(g[:, 1 * H:2 * H])
        o = jax.nn.sigmoid(g[:, 2 * H:3 * H])
        gg = jnp.tanh(g[:, 3 * H:])
        c = f * c + i * gg
        h = o * jnp.tanh(c)
    z = jnp.maximum(h, 0.0)
    z = jnp.maximum(z @ params["w1_t"].astype(jnp.float32) + params["b1"][0], 0.0)
    z = jnp.maximum(z @ params["w2_t"].astype(jnp.float32) + params["b2"][0], 0.0)
    z = z @ params["w3_t"].astype(jnp.float32)[:, :OUT] + params["b3"][0, :OUT]
    return z


if __name__ == "__main__":
    key = jax.random.PRNGKey(0)
    k_param, k_x = jax.random.split(key)

    B, T = 2, 8
    params = init_params(k_param)
    x = jax.random.normal(k_x, (B, T, INPUT_SIZE), jnp.float32)

    out = net_forward(x, params)
    jax.block_until_ready(out)
    assert out.shape == (B, OUT), out.shape

    ref = _reference_forward(x, params)
    err = float(jnp.max(jnp.abs(out - ref)))
    assert err < 5e-2, f"max abs error vs reference too large: {err}"

    print("KERNEL_OK")
</pallas_src>

<mosaic_0001>
module attributes {stable_mosaic.version = 11 : i64} {
  func.func @_net_kernel(%arg0: i32, %arg1: memref<64x8xf32, #tpu.memory_space<vmem>>, %arg2: memref<8x256xbf16, #tpu.memory_space<vmem>>, %arg3: memref<1x256xf32, #tpu.memory_space<vmem>>, %arg4: memref<64x256xbf16, #tpu.memory_space<vmem>>, %arg5: memref<64x64xbf16, #tpu.memory_space<vmem>>, %arg6: memref<1x64xf32, #tpu.memory_space<vmem>>, %arg7: memref<64x32xbf16, #tpu.memory_space<vmem>>, %arg8: memref<1x32xf32, #tpu.memory_space<vmem>>, %arg9: memref<32x128xbf16, #tpu.memory_space<vmem>>, %arg10: memref<1x128xf32, #tpu.memory_space<vmem>>, %arg11: memref<8x128xf32, #tpu.memory_space<vmem>>, %arg12: memref<64x256xf32, #tpu.memory_space<vmem>>) attributes {dimension_semantics = [#tpu.dimension_semantics<parallel>], iteration_bounds = array<i64: 1>, scalar_prefetch = 0 : i64, scratch_operands = 1 : i64, tpu.core_type = #tpu.core_type<tc>, window_params = [{transform_indices = @transform_0, window_bounds = array<i64: 64, 8>}, {pipeline_mode = #tpu.pipeline_mode<synchronous>, transform_indices = @transform_1, window_bounds = array<i64: 8, 256>}, {pipeline_mode = #tpu.pipeline_mode<synchronous>, transform_indices = @transform_2, window_bounds = array<i64: 1, 256>}, {pipeline_mode = #tpu.pipeline_mode<synchronous>, transform_indices = @transform_3, window_bounds = array<i64: 64, 256>}, {pipeline_mode = #tpu.pipeline_mode<synchronous>, transform_indices = @transform_4, window_bounds = array<i64: 64, 64>}, {pipeline_mode = #tpu.pipeline_mode<synchronous>, transform_indices = @transform_5, window_bounds = array<i64: 1, 64>}, {pipeline_mode = #tpu.pipeline_mode<synchronous>, transform_indices = @transform_6, window_bounds = array<i64: 64, 32>}, {pipeline_mode = #tpu.pipeline_mode<synchronous>, transform_indices = @transform_7, window_bounds = array<i64: 1, 32>}, {pipeline_mode = #tpu.pipeline_mode<synchronous>, transform_indices = @transform_8, window_bounds = array<i64: 32, 128>}, {pipeline_mode = #tpu.pipeline_mode<synchronous>, transform_indices = @transform_9, window_bounds = array<i64: 1, 128>}, {transform_indices = @transform_10, window_bounds = array<i64: 8, 128>}]} {
    %c0 = arith.constant 0 : index
    %c0_0 = arith.constant 0 : index
    %0 = vector.load %arg1[%c0, %c0_0] : memref<64x8xf32, #tpu.memory_space<vmem>>, vector<64x8xf32>
    %1 = arith.truncf %0 : vector<64x8xf32> to vector<64x8xbf16>
    %c0_1 = arith.constant 0 : index
    %c0_2 = arith.constant 0 : index
    %2 = vector.load %arg2[%c0_1, %c0_2] : memref<8x256xbf16, #tpu.memory_space<vmem>>, vector<8x256xbf16>
    %cst = arith.constant dense<0.000000e+00> : vector<64x256xf32>
    %3 = tpu.matmul %1, %2, %cst {dimension_numbers = #tpu.dot_dimension_numbers<[1], [0], [0], [1], [0, 0, 1, 1], [], []>} : vector<64x8xbf16>, vector<8x256xbf16>, vector<64x256xf32> -> vector<64x256xf32>
    %c0_3 = arith.constant 0 : index
    %c0_4 = arith.constant 0 : index
    %4 = vector.load %arg3[%c0_3, %c0_4] : memref<1x256xf32, #tpu.memory_space<vmem>>, vector<1x256xf32>
    %5 = vector.broadcast %4 : vector<1x256xf32> to vector<64x256xf32>
    %6 = arith.addf %3, %5 : vector<64x256xf32>
    %c0_5 = arith.constant 0 : index
    %c0_6 = arith.constant 0 : index
    %7 = vector.load %arg12[%c0_5, %c0_6] : memref<64x256xf32, #tpu.memory_space<vmem>>, vector<64x256xf32>
    tpu.vector_store %arg12[%c0_5, %c0_6], %6 {strides = array<i32>} : memref<64x256xf32, #tpu.memory_space<vmem>>, vector<64x256xf32>,
    %c0_7 = arith.constant 0 : index
    %c0_8 = arith.constant 0 : index
    %8 = vector.load %arg4[%c0_7, %c0_8] : memref<64x256xbf16, #tpu.memory_space<vmem>>, vector<64x256xbf16>
    %cst_9 = arith.constant 0.000000e+00 : f32
    %9 = vector.broadcast %cst_9 : f32 to vector<8x64xf32>
    %cst_10 = arith.constant 0.000000e+00 : f32
    %10 = vector.broadcast %cst_10 : f32 to vector<8x64xf32>
    %c0_11 = arith.constant 0 : index
    %c0_12 = arith.constant 0 : index
    %11 = vector.load %arg12[%c0_11, %c0_12] : memref<64x256xf32, #tpu.memory_space<vmem>>, vector<8x256xf32>
    %12 = arith.truncf %9 : vector<8x64xf32> to vector<8x64xbf16>
    %cst_13 = arith.constant dense<0.000000e+00> : vector<8x256xf32>
    %13 = tpu.matmul %12, %8, %cst_13 {dimension_numbers = #tpu.dot_dimension_numbers<[1], [0], [0], [1], [0, 0, 1, 1], [], []>} : vector<8x64xbf16>, vector<64x256xbf16>, vector<8x256xf32> -> vector<8x256xf32>
    %14 = arith.addf %11, %13 : vector<8x256xf32>
    %15 = vector.extract_strided_slice %14 {offsets = [0, 0], sizes = [8, 192], strides = [1, 1]} : vector<8x256xf32> to vector<8x192xf32>
    %cst_14 = arith.constant 0.000000e+00 : f32
    %16 = vector.broadcast %cst_14 : f32 to vector<8x192xf32>
    %17 = arith.subf %16, %15 : vector<8x192xf32>
    %18 = math.exp %17 : vector<8x192xf32>
    %cst_15 = arith.constant 1.000000e+00 : f32
    %19 = vector.broadcast %cst_15 : f32 to vector<8x192xf32>
    %20 = arith.addf %19, %18 : vector<8x192xf32>
    %21 = tpu.reciprocal %20 {approx = true} : vector<8x192xf32> -> vector<8x192xf32>
    %22 = vector.extract_strided_slice %14 {offsets = [0, 192], sizes = [8, 64], strides = [1, 1]} : vector<8x256xf32> to vector<8x64xf32>
    %23 = math.tanh %22 : vector<8x64xf32>
    %24 = vector.extract_strided_slice %21 {offsets = [0, 0], sizes = [8, 64], strides = [1, 1]} : vector<8x192xf32> to vector<8x64xf32>
    %25 = vector.extract_strided_slice %21 {offsets = [0, 64], sizes = [8, 64], strides = [1, 1]} : vector<8x192xf32> to vector<8x64xf32>
    %26 = vector.extract_strided_slice %21 {offsets = [0, 128], sizes = [8, 64], strides = [1, 1]} : vector<8x192xf32> to vector<8x64xf32>
    %27 = arith.mulf %25, %10 : vector<8x64xf32>
    %28 = arith.mulf %24, %23 : vector<8x64xf32>
    %29 = arith.addf %27, %28 : vector<8x64xf32>
    %30 = math.tanh %29 : vector<8x64xf32>
    %31 = arith.mulf %26, %30 : vector<8x64xf32>
    %c8 = arith.constant 8 : index
    %c0_16 = arith.constant 0 : index
    %32 = vector.load %arg12[%c8, %c0_16] : memref<64x256xf32, #tpu.memory_space<vmem>>, vector<8x256xf32>
    %33 = arith.truncf %31 : vector<8x64xf32> to vector<8x64xbf16>
    %cst_17 = arith.constant dense<0.000000e+00> : vector<8x256xf32>
    %34 = tpu.matmul %33, %8, %cst_17 {dimension_numbers = #tpu.dot_dimension_numbers<[1], [0], [0], [1], [0, 0, 1, 1], [], []>} : vector<8x64xbf16>, vector<64x256xbf16>, vector<8x256xf32> -> vector<8x256xf32>
    %35 = arith.addf %32, %34 : vector<8x256xf32>
    %36 = vector.extract_strided_slice %35 {offsets = [0, 0], sizes = [8, 192], strides = [1, 1]} : vector<8x256xf32> to vector<8x192xf32>
    %cst_18 = arith.constant 0.000000e+00 : f32
    %37 = vector.broadcast %cst_18 : f32 to vector<8x192xf32>
    %38 = arith.subf %37, %36 : vector<8x192xf32>
    %39 = math.exp %38 : vector<8x192xf32>
    %cst_19 = arith.constant 1.000000e+00 : f32
    %40 = vector.broadcast %cst_19 : f32 to vector<8x192xf32>
    %41 = arith.addf %40, %39 : vector<8x192xf32>
    %42 = tpu.reciprocal %41 {approx = true} : vector<8x192xf32> -> vector<8x192xf32>
    %43 = vector.extract_strided_slice %35 {offsets = [0, 192], sizes = [8, 64], strides = [1, 1]} : vector<8x256xf32> to vector<8x64xf32>
    %44 = math.tanh %43 : vector<8x64xf32>
    %45 = vector.extract_strided_slice %42 {offsets = [0, 0], sizes = [8, 64], strides = [1, 1]} : vector<8x192xf32> to vector<8x64xf32>
    %46 = vector.extract_strided_slice %42 {offsets = [0, 64], sizes = [8, 64], strides = [1, 1]} : vector<8x192xf32> to vector<8x64xf32>
    %47 = vector.extract_strided_slice %42 {offsets = [0, 128], sizes = [8, 64], strides = [1, 1]} : vector<8x192xf32> to vector<8x64xf32>
    %48 = arith.mulf %46, %29 : vector<8x64xf32>
    %49 = arith.mulf %45, %44 : vector<8x64xf32>
    %50 = arith.addf %48, %49 : vector<8x64xf32>
    %51 = math.tanh %50 : vector<8x64xf32>
    %52 = arith.mulf %47, %51 : vector<8x64xf32>
    %c16 = arith.constant 16 : index
    %c0_20 = arith.constant 0 : index
    %53 = vector.load %arg12[%c16, %c0_20] : memref<64x256xf32, #tpu.memory_space<vmem>>, vector<8x256xf32>
    %54 = arith.truncf %52 : vector<8x64xf32> to vector<8x64xbf16>
    %cst_21 = arith.constant dense<0.000000e+00> : vector<8x256xf32>
    %55 = tpu.matmul %54, %8, %cst_21 {dimension_numbers = #tpu.dot_dimension_numbers<[1], [0], [0], [1], [0, 0, 1, 1], [], []>} : vector<8x64xbf16>, vector<64x256xbf16>, vector<8x256xf32> -> vector<8x256xf32>
    %56 = arith.addf %53, %55 : vector<8x256xf32>
    %57 = vector.extract_strided_slice %56 {offsets = [0, 0], sizes = [8, 192], strides = [1, 1]} : vector<8x256xf32> to vector<8x192xf32>
    %cst_22 = arith.constant 0.000000e+00 : f32
    %58 = vector.broadcast %cst_22 : f32 to vector<8x192xf32>
    %59 = arith.subf %58, %57 : vector<8x192xf32>
    %60 = math.exp %59 : vector<8x192xf32>
    %cst_23 = arith.constant 1.000000e+00 : f32
    %61 = vector.broadcast %cst_23 : f32 to vector<8x192xf32>
    %62 = arith.addf %61, %60 : vector<8x192xf32>
    %63 = tpu.reciprocal %62 {approx = true} : vector<8x192xf32> -> vector<8x192xf32>
    %64 = vector.extract_strided_slice %56 {offsets = [0, 192], sizes = [8, 64], strides = [1, 1]} : vector<8x256xf32> to vector<8x64xf32>
    %65 = math.tanh %64 : vector<8x64xf32>
    %66 = vector.extract_strided_slice %63 {offsets = [0, 0], sizes = [8, 64], strides = [1, 1]} : vector<8x192xf32> to vector<8x64xf32>
    %67 = vector.extract_strided_slice %63 {offsets = [0, 64], sizes = [8, 64], strides = [1, 1]} : vector<8x192xf32> to vector<8x64xf32>
    %68 = vector.extract_strided_slice %63 {offsets = [0, 128], sizes = [8, 64], strides = [1, 1]} : vector<8x192xf32> to vector<8x64xf32>
    %69 = arith.mulf %67, %50 : vector<8x64xf32>
    %70 = arith.mulf %66, %65 : vector<8x64xf32>
    %71 = arith.addf %69, %70 : vector<8x64xf32>
    %72 = math.tanh %71 : vector<8x64xf32>
    %73 = arith.mulf %68, %72 : vector<8x64xf32>
    %c24 = arith.constant 24 : index
    %c0_24 = arith.constant 0 : index
    %74 = vector.load %arg12[%c24, %c0_24] : memref<64x256xf32, #tpu.memory_space<vmem>>, vector<8x256xf32>
    %75 = arith.truncf %73 : vector<8x64xf32> to vector<8x64xbf16>
    %cst_25 = arith.constant dense<0.000000e+00> : vector<8x256xf32>
    %76 = tpu.matmul %75, %8, %cst_25 {dimension_numbers = #tpu.dot_dimension_numbers<[1], [0], [0], [1], [0, 0, 1, 1], [], []>} : vector<8x64xbf16>, vector<64x256xbf16>, vector<8x256xf32> -> vector<8x256xf32>
    %77 = arith.addf %74, %76 : vector<8x256xf32>
    %78 = vector.extract_strided_slice %77 {offsets = [0, 0], sizes = [8, 192], strides = [1, 1]} : vector<8x256xf32> to vector<8x192xf32>
    %cst_26 = arith.constant 0.000000e+00 : f32
    %79 = vector.broadcast %cst_26 : f32 to vector<8x192xf32>
    %80 = arith.subf %79, %78 : vector<8x192xf32>
    %81 = math.exp %80 : vector<8x192xf32>
    %cst_27 = arith.constant 1.000000e+00 : f32
    %82 = vector.broadcast %cst_27 : f32 to vector<8x192xf32>
    %83 = arith.addf %82, %81 : vector<8x192xf32>
    %84 = tpu.reciprocal %83 {approx = true} : vector<8x192xf32> -> vector<8x192xf32>
    %85 = vector.extract_strided_slice %77 {offsets = [0, 192], sizes = [8, 64], strides = [1, 1]} : vector<8x256xf32> to vector<8x64xf32>
    %86 = math.tanh %85 : vector<8x64xf32>
    %87 = vector.extract_strided_slice %84 {offsets = [0, 0], sizes = [8, 64], strides = [1, 1]} : vector<8x192xf32> to vector<8x64xf32>
    %88 = vector.extract_strided_slice %84 {offsets = [0, 64], sizes = [8, 64], strides = [1, 1]} : vector<8x192xf32> to vector<8x64xf32>
    %89 = vector.extract_strided_slice %84 {offsets = [0, 128], sizes = [8, 64], strides = [1, 1]} : vector<8x192xf32> to vector<8x64xf32>
    %90 = arith.mulf %88, %71 : vector<8x64xf32>
    %91 = arith.mulf %87, %86 : vector<8x64xf32>
    %92 = arith.addf %90, %91 : vector<8x64xf32>
    %93 = math.tanh %92 : vector<8x64xf32>
    %94 = arith.mulf %89, %93 : vector<8x64xf32>
    %c32 = arith.constant 32 : index
    %c0_28 = arith.constant 0 : index
    %95 = vector.load %arg12[%c32, %c0_28] : memref<64x256xf32, #tpu.memory_space<vmem>>, vector<8x256xf32>
    %96 = arith.truncf %94 : vector<8x64xf32> to vector<8x64xbf16>
    %cst_29 = arith.constant dense<0.000000e+00> : vector<8x256xf32>
    %97 = tpu.matmul %96, %8, %cst_29 {dimension_numbers = #tpu.dot_dimension_numbers<[1], [0], [0], [1], [0, 0, 1, 1], [], []>} : vector<8x64xbf16>, vector<64x256xbf16>, vector<8x256xf32> -> vector<8x256xf32>
    %98 = arith.addf %95, %97 : vector<8x256xf32>
    %99 = vector.extract_strided_slice %98 {offsets = [0, 0], sizes = [8, 192], strides = [1, 1]} : vector<8x256xf32> to vector<8x192xf32>
    %cst_30 = arith.constant 0.000000e+00 : f32
    %100 = vector.broadcast %cst_30 : f32 to vector<8x192xf32>
    %101 = arith.subf %100, %99 : vector<8x192xf32>
    %102 = math.exp %101 : vector<8x192xf32>
    %cst_31 = arith.constant 1.000000e+00 : f32
    %103 = vector.broadcast %cst_31 : f32 to vector<8x192xf32>
    %104 = arith.addf %103, %102 : vector<8x192xf32>
    %105 = tpu.reciprocal %104 {approx = true} : vector<8x192xf32> -> vector<8x192xf32>
    %106 = vector.extract_strided_slice %98 {offsets = [0, 192], sizes = [8, 64], strides = [1, 1]} : vector<8x256xf32> to vector<8x64xf32>
    %107 = math.tanh %106 : vector<8x64xf32>
    %108 = vector.extract_strided_slice %105 {offsets = [0, 0], sizes = [8, 64], strides = [1, 1]} : vector<8x192xf32> to vector<8x64xf32>
    %109 = vector.extract_strided_slice %105 {offsets = [0, 64], sizes = [8, 64], strides = [1, 1]} : vector<8x192xf32> to vector<8x64xf32>
    %110 = vector.extract_strided_slice %105 {offsets = [0, 128], sizes = [8, 64], strides = [1, 1]} : vector<8x192xf32> to vector<8x64xf32>
    %111 = arith.mulf %109, %92 : vector<8x64xf32>
    %112 = arith.mulf %108, %107 : vector<8x64xf32>
    %113 = arith.addf %111, %112 : vector<8x64xf32>
    %114 = math.tanh %113 : vector<8x64xf32>
    %115 = arith.mulf %110, %114 : vector<8x64xf32>
    %c40 = arith.constant 40 : index
    %c0_32 = arith.constant 0 : index
    %116 = vector.load %arg12[%c40, %c0_32] : memref<64x256xf32, #tpu.memory_space<vmem>>, vector<8x256xf32>
    %117 = arith.truncf %115 : vector<8x64xf32> to vector<8x64xbf16>
    %cst_33 = arith.constant dense<0.000000e+00> : vector<8x256xf32>
    %118 = tpu.matmul %117, %8, %cst_33 {dimension_numbers = #tpu.dot_dimension_numbers<[1], [0], [0], [1], [0, 0, 1, 1], [], []>} : vector<8x64xbf16>, vector<64x256xbf16>, vector<8x256xf32> -> vector<8x256xf32>
    %119 = arith.addf %116, %118 : vector<8x256xf32>
    %120 = vector.extract_strided_slice %119 {offsets = [0, 0], sizes = [8, 192], strides = [1, 1]} : vector<8x256xf32> to vector<8x192xf32>
    %cst_34 = arith.constant 0.000000e+00 : f32
    %121 = vector.broadcast %cst_34 : f32 to vector<8x192xf32>
    %122 = arith.subf %121, %120 : vector<8x192xf32>
    %123 = math.exp %122 : vector<8x192xf32>
    %cst_35 = arith.constant 1.000000e+00 : f32
    %124 = vector.broadcast %cst_35 : f32 to vector<8x192xf32>
    %125 = arith.addf %124, %123 : vector<8x192xf32>
    %126 = tpu.reciprocal %125 {approx = true} : vector<8x192xf32> -> vector<8x192xf32>
    %127 = vector.extract_strided_slice %119 {offsets = [0, 192], sizes = [8, 64], strides = [1, 1]} : vector<8x256xf32> to vector<8x64xf32>
    %128 = math.tanh %127 : vector<8x64xf32>
    %129 = vector.extract_strided_slice %126 {offsets = [0, 0], sizes = [8, 64], strides = [1, 1]} : vector<8x192xf32> to vector<8x64xf32>
    %130 = vector.extract_strided_slice %126 {offsets = [0, 64], sizes = [8, 64], strides = [1, 1]} : vector<8x192xf32> to vector<8x64xf32>
    %131 = vector.extract_strided_slice %126 {offsets = [0, 128], sizes = [8, 64], strides = [1, 1]} : vector<8x192xf32> to vector<8x64xf32>
    %132 = arith.mulf %130, %113 : vector<8x64xf32>
    %133 = arith.mulf %129, %128 : vector<8x64xf32>
    %134 = arith.addf %132, %133 : vector<8x64xf32>
    %135 = math.tanh %134 : vector<8x64xf32>
    %136 = arith.mulf %131, %135 : vector<8x64xf32>
    %c48 = arith.constant 48 : index
    %c0_36 = arith.constant 0 : index
    %137 = vector.load %arg12[%c48, %c0_36] : memref<64x256xf32, #tpu.memory_space<vmem>>, vector<8x256xf32>
    %138 = arith.truncf %136 : vector<8x64xf32> to vector<8x64xbf16>
    %cst_37 = arith.constant dense<0.000000e+00> : vector<8x256xf32>
    %139 = tpu.matmul %138, %8, %cst_37 {dimension_numbers = #tpu.dot_dimension_numbers<[1], [0], [0], [1], [0, 0, 1, 1], [], []>} : vector<8x64xbf16>, vector<64x256xbf16>, vector<8x256xf32> -> vector<8x256xf32>
    %140 = arith.addf %137, %139 : vector<8x256xf32>
    %141 = vector.extract_strided_slice %140 {offsets = [0, 0], sizes = [8, 192], strides = [1, 1]} : vector<8x256xf32> to vector<8x192xf32>
    %cst_38 = arith.constant 0.000000e+00 : f32
    %142 = vector.broadcast %cst_38 : f32 to vector<8x192xf32>
    %143 = arith.subf %142, %141 : vector<8x192xf32>
    %144 = math.exp %143 : vector<8x192xf32>
    %cst_39 = arith.constant 1.000000e+00 : f32
    %145 = vector.broadcast %cst_39 : f32 to vector<8x192xf32>
    %146 = arith.addf %145, %144 : vector<8x192xf32>
    %147 = tpu.reciprocal %146 {approx = true} : vector<8x192xf32> -> vector<8x192xf32>
    %148 = vector.extract_strided_slice %140 {offsets = [0, 192], sizes = [8, 64], strides = [1, 1]} : vector<8x256xf32> to vector<8x64xf32>
    %149 = math.tanh %148 : vector<8x64xf32>
    %150 = vector.extract_strided_slice %147 {offsets = [0, 0], sizes = [8, 64], strides = [1, 1]} : vector<8x192xf32> to vector<8x64xf32>
    %151 = vector.extract_strided_slice %147 {offsets = [0, 64], sizes = [8, 64], strides = [1, 1]} : vector<8x192xf32> to vector<8x64xf32>
    %152 = vector.extract_strided_slice %147 {offsets = [0, 128], sizes = [8, 64], strides = [1, 1]} : vector<8x192xf32> to vector<8x64xf32>
    %153 = arith.mulf %151, %134 : vector<8x64xf32>
    %154 = arith.mulf %150, %149 : vector<8x64xf32>
    %155 = arith.addf %153, %154 : vector<8x64xf32>
    %156 = math.tanh %155 : vector<8x64xf32>
    %157 = arith.mulf %152, %156 : vector<8x64xf32>
    %c56 = arith.constant 56 : index
    %c0_40 = arith.constant 0 : index
    %158 = vector.load %arg12[%c56, %c0_40] : memref<64x256xf32, #tpu.memory_space<vmem>>, vector<8x256xf32>
    %159 = arith.truncf %157 : vector<8x64xf32> to vector<8x64xbf16>
    %cst_41 = arith.constant dense<0.000000e+00> : vector<8x256xf32>
    %160 = tpu.matmul %159, %8, %cst_41 {dimension_numbers = #tpu.dot_dimension_numbers<[1], [0], [0], [1], [0, 0, 1, 1], [], []>} : vector<8x64xbf16>, vector<64x256xbf16>, vector<8x256xf32> -> vector<8x256xf32>
    %161 = arith.addf %158, %160 : vector<8x256xf32>
    %162 = vector.extract_strided_slice %161 {offsets = [0, 0], sizes = [8, 192], strides = [1, 1]} : vector<8x256xf32> to vector<8x192xf32>
    %cst_42 = arith.constant 0.000000e+00 : f32
    %163 = vector.broadcast %cst_42 : f32 to vector<8x192xf32>
    %164 = arith.subf %163, %162 : vector<8x192xf32>
    %165 = math.exp %164 : vector<8x192xf32>
    %cst_43 = arith.constant 1.000000e+00 : f32
    %166 = vector.broadcast %cst_43 : f32 to vector<8x192xf32>
    %167 = arith.addf %166, %165 : vector<8x192xf32>
    %168 = tpu.reciprocal %167 {approx = true} : vector<8x192xf32> -> vector<8x192xf32>
    %169 = vector.extract_strided_slice %161 {offsets = [0, 192], sizes = [8, 64], strides = [1, 1]} : vector<8x256xf32> to vector<8x64xf32>
    %170 = math.tanh %169 : vector<8x64xf32>
    %171 = vector.extract_strided_slice %168 {offsets = [0, 0], sizes = [8, 64], strides = [1, 1]} : vector<8x192xf32> to vector<8x64xf32>
    %172 = vector.extract_strided_slice %168 {offsets = [0, 64], sizes = [8, 64], strides = [1, 1]} : vector<8x192xf32> to vector<8x64xf32>
    %173 = vector.extract_strided_slice %168 {offsets = [0, 128], sizes = [8, 64], strides = [1, 1]} : vector<8x192xf32> to vector<8x64xf32>
    %174 = arith.mulf %172, %155 : vector<8x64xf32>
    %175 = arith.mulf %171, %170 : vector<8x64xf32>
    %176 = arith.addf %174, %175 : vector<8x64xf32>
    %177 = math.tanh %176 : vector<8x64xf32>
    %178 = arith.mulf %173, %177 : vector<8x64xf32>
    %cst_44 = arith.constant 0.000000e+00 : f32
    %179 = vector.broadcast %cst_44 : f32 to vector<8x64xf32>
    %180 = arith.maximumf %178, %179 : vector<8x64xf32>
    %181 = arith.truncf %180 : vector<8x64xf32> to vector<8x64xbf16>
    %c0_45 = arith.constant 0 : index
    %c0_46 = arith.constant 0 : index
    %182 = vector.load %arg5[%c0_45, %c0_46] : memref<64x64xbf16, #tpu.memory_space<vmem>>, vector<64x64xbf16>
    %cst_47 = arith.constant dense<0.000000e+00> : vector<8x64xf32>
    %183 = tpu.matmul %181, %182, %cst_47 {dimension_numbers = #tpu.dot_dimension_numbers<[1], [0], [0], [1], [0, 0, 1, 1], [], []>} : vector<8x64xbf16>, vector<64x64xbf16>, vector<8x64xf32> -> vector<8x64xf32>
    %c0_48 = arith.constant 0 : index
    %c0_49 = arith.constant 0 : index
    %184 = vector.load %arg6[%c0_48, %c0_49] : memref<1x64xf32, #tpu.memory_space<vmem>>, vector<1x64xf32>
    %185 = vector.broadcast %184 : vector<1x64xf32> to vector<8x64xf32>
    %186 = arith.addf %183, %185 : vector<8x64xf32>
    %cst_50 = arith.constant 0.000000e+00 : f32
    %187 = vector.broadcast %cst_50 : f32 to vector<8x64xf32>
    %188 = arith.maximumf %186, %187 : vector<8x64xf32>
    %189 = arith.truncf %188 : vector<8x64xf32> to vector<8x64xbf16>
    %c0_51 = arith.constant 0 : index
    %c0_52 = arith.constant 0 : index
    %190 = vector.load %arg7[%c0_51, %c0_52] : memref<64x32xbf16, #tpu.memory_space<vmem>>, vector<64x32xbf16>
    %cst_53 = arith.constant dense<0.000000e+00> : vector<8x32xf32>
    %191 = tpu.matmul %189, %190, %cst_53 {dimension_numbers = #tpu.dot_dimension_numbers<[1], [0], [0], [1], [0, 0, 1, 1], [], []>} : vector<8x64xbf16>, vector<64x32xbf16>, vector<8x32xf32> -> vector<8x32xf32>
    %c0_54 = arith.constant 0 : index
    %c0_55 = arith.constant 0 : index
    %192 = vector.load %arg8[%c0_54, %c0_55] : memref<1x32xf32, #tpu.memory_space<vmem>>, vector<1x32xf32>
    %193 = vector.broadcast %192 : vector<1x32xf32> to vector<8x32xf32>
    %194 = arith.addf %191, %193 : vector<8x32xf32>
    %cst_56 = arith.constant 0.000000e+00 : f32
    %195 = vector.broadcast %cst_56 : f32 to vector<8x32xf32>
    %196 = arith.maximumf %194, %195 : vector<8x32xf32>
    %197 = arith.truncf %196 : vector<8x32xf32> to vector<8x32xbf16>
    %c0_57 = arith.constant 0 : index
    %c0_58 = arith.constant 0 : index
    %198 = vector.load %arg9[%c0_57, %c0_58] : memref<32x128xbf16, #tpu.memory_space<vmem>>, vector<32x128xbf16>
    %cst_59 = arith.constant dense<0.000000e+00> : vector<8x128xf32>
    %199 = tpu.matmul %197, %198, %cst_59 {dimension_numbers = #tpu.dot_dimension_numbers<[1], [0], [0], [1], [0, 0, 1, 1], [], []>} : vector<8x32xbf16>, vector<32x128xbf16>, vector<8x128xf32> -> vector<8x128xf32>
    %c0_60 = arith.constant 0 : index
    %c0_61 = arith.constant 0 : index
    %200 = vector.load %arg10[%c0_60, %c0_61] : memref<1x128xf32, #tpu.memory_space<vmem>>, vector<1x128xf32>
    %201 = vector.broadcast %200 : vector<1x128xf32> to vector<8x128xf32>
    %202 = arith.addf %199, %201 : vector<8x128xf32>
    %c0_62 = arith.constant 0 : index
    %c0_63 = arith.constant 0 : index
    %203 = vector.load %arg11[%c0_62, %c0_63] : memref<8x128xf32, #tpu.memory_space<vmem>>, vector<8x128xf32>
    tpu.vector_store %arg11[%c0_62, %c0_63], %202 {strides = array<i32>} : memref<8x128xf32, #tpu.memory_space<vmem>>, vector<8x128xf32>,
    return
  }
  func.func @transform_0(%arg0: i32) -> (i32, i32) {
    %c0_i32 = arith.constant 0 : i32
    %c0_i32_0 = arith.constant 0 : i32
    return %arg0, %c0_i32 : i32, i32
  }
  func.func @transform_1(%arg0: i32) -> (i32, i32) {
    %c0_i32 = arith.constant 0 : i32
    %c0_i32_0 = arith.constant 0 : i32
    %c0_i32_1 = arith.constant 0 : i32
    return %c0_i32, %c0_i32_0 : i32, i32
  }
  func.func @transform_2(%arg0: i32) -> (i32, i32) {
    %c0_i32 = arith.constant 0 : i32
    %c0_i32_0 = arith.constant 0 : i32
    %c0_i32_1 = arith.constant 0 : i32
    return %c0_i32, %c0_i32_0 : i32, i32
  }
  func.func @transform_3(%arg0: i32) -> (i32, i32) {
    %c0_i32 = arith.constant 0 : i32
    %c0_i32_0 = arith.constant 0 : i32
    %c0_i32_1 = arith.constant 0 : i32
    return %c0_i32, %c0_i32_0 : i32, i32
  }
  func.func @transform_4(%arg0: i32) -> (i32, i32) {
    %c0_i32 = arith.constant 0 : i32
    %c0_i32_0 = arith.constant 0 : i32
    %c0_i32_1 = arith.constant 0 : i32
    return %c0_i32, %c0_i32_0 : i32, i32
  }
  func.func @transform_5(%arg0: i32) -> (i32, i32) {
    %c0_i32 = arith.constant 0 : i32
    %c0_i32_0 = arith.constant 0 : i32
    %c0_i32_1 = arith.constant 0 : i32
    return %c0_i32, %c0_i32_0 : i32, i32
  }
  func.func @transform_6(%arg0: i32) -> (i32, i32) {
    %c0_i32 = arith.constant 0 : i32
    %c0_i32_0 = arith.constant 0 : i32
    %c0_i32_1 = arith.constant 0 : i32
    return %c0_i32, %c0_i32_0 : i32, i32
  }
  func.func @transform_7(%arg0: i32) -> (i32, i32) {
    %c0_i32 = arith.constant 0 : i32
    %c0_i32_0 = arith.constant 0 : i32
    %c0_i32_1 = arith.constant 0 : i32
    return %c0_i32, %c0_i32_0 : i32, i32
  }
  func.func @transform_8(%arg0: i32) -> (i32, i32) {
    %c0_i32 = arith.constant 0 : i32
    %c0_i32_0 = arith.constant 0 : i32
    %c0_i32_1 = arith.constant 0 : i32
    return %c0_i32, %c0_i32_0 : i32, i32
  }
  func.func @transform_9(%arg0: i32) -> (i32, i32) {
    %c0_i32 = arith.constant 0 : i32
    %c0_i32_0 = arith.constant 0 : i32
    %c0_i32_1 = arith.constant 0 : i32
    return %c0_i32, %c0_i32_0 : i32, i32
  }
  func.func @transform_10(%arg0: i32) -> (i32, i32) {
    %c0_i32 = arith.constant 0 : i32
    %c0_i32_0 = arith.constant 0 : i32
    return %arg0, %c0_i32 : i32, i32
  }
}

</mosaic_0001>

<llo_original>
// kernel: net_forward.1
$region0: #{net_forward.1}
  #allocation0 [shape = 'u32[]', space=smem, size = 0x4, offset = 0x4, fixed_abs, tag = 'smem constant byte address 0x4 - core index']
  #allocation1 [shape = 'u32[72,128]{1,0:T(1,128)}', space=vmem, size = 0x9000, scoped, tag = 'internal scratch']
  #allocation2 [shape = 'f32[64,256]{1,0:T(8,128)}', space=vmem, size = 0x10000, scoped, tag = 'scratch operand']
  %s0 = inlined_call_operand.vmem [shape: f32[64,8], index: 0, kind: input, shape index: {}]
  %s1 = inlined_call_operand.vmem [shape: bf16[8,256], index: 1, kind: input, shape index: {}]
  %s2 = inlined_call_operand.vmem [shape: f32[1,256], index: 2, kind: input, shape index: {}]
  %s3 = inlined_call_operand.vmem [shape: bf16[64,256], index: 3, kind: input, shape index: {}]
  %s4 = inlined_call_operand.vmem [shape: bf16[64,64], index: 4, kind: input, shape index: {}]
  %s5 = inlined_call_operand.vmem [shape: f32[1,64], index: 5, kind: input, shape index: {}]
  %s6 = inlined_call_operand.vmem [shape: bf16[64,32], index: 6, kind: input, shape index: {}]
  %s7 = inlined_call_operand.vmem [shape: f32[1,32], index: 7, kind: input, shape index: {}]
  %s8 = inlined_call_operand.vmem [shape: bf16[32,128], index: 8, kind: input, shape index: {}]
  %s9 = inlined_call_operand.vmem [shape: f32[1,128], index: 9, kind: input, shape index: {}]
  %s10 = inlined_call_operand.vmem [shape: f32[8,128], index: 10, kind: output, shape index: {}]
  %s11 = sld [smem:[#allocation0]]
  $region50: #{net_forward.1} parent=0
    _
  %s13 = ssub.s32 1, %s11
  %s14 = scalar_select 0, %s13, %s11
  // Predicated region
  $region2: #{net_forward.1} parent=0 // pred_check
    _
  $region3: #{net_forward.1} parent=0 // pred_check_branch
    %16 = sbr.rel (0) target = $region5
  $region4: #{net_forward.1} parent=0 // pred_region
    _
  $region5: #{net_forward.1} parent=0 // pred_fallthru
    _
  // Predicated region
  $region6: #{net_forward.1} parent=0 // pred_check
    _
  $region7: #{net_forward.1} parent=0 // pred_check_branch
    %18 = sbr.rel (0) target = $region9
  $region8: #{net_forward.1} parent=0 // pred_region
    _
  $region9: #{net_forward.1} parent=0 // pred_fallthru
    _
  // Predicated region
  $region10: #{net_forward.1} parent=0 // pred_check
    _
  $region11: #{net_forward.1} parent=0 // pred_check_branch
    %20 = sbr.rel (0) target = $region13
  $region12: #{net_forward.1} parent=0 // pred_region
    _
  $region13: #{net_forward.1} parent=0 // pred_fallthru
    _
  // Predicated region
  $region14: #{net_forward.1} parent=0 // pred_check
    _
  $region15: #{net_forward.1} parent=0 // pred_check_branch
    %22 = sbr.rel (0) target = $region17
  $region16: #{net_forward.1} parent=0 // pred_region
    _
  $region17: #{net_forward.1} parent=0 // pred_fallthru
    _
  // Predicated region
  $region18: #{net_forward.1} parent=0 // pred_check
    _
  $region19: #{net_forward.1} parent=0 // pred_check_branch
    %24 = sbr.rel (0) target = $region21
  $region20: #{net_forward.1} parent=0 // pred_region
    _
  $region21: #{net_forward.1} parent=0 // pred_fallthru
    _
  // Predicated region
  $region22: #{net_forward.1} parent=0 // pred_check
    _
  $region23: #{net_forward.1} parent=0 // pred_check_branch
    %26 = sbr.rel (0) target = $region25
  $region24: #{net_forward.1} parent=0 // pred_region
    _
  $region25: #{net_forward.1} parent=0 // pred_fallthru
    _
  // Predicated region
  $region26: #{net_forward.1} parent=0 // pred_check
    _
  $region27: #{net_forward.1} parent=0 // pred_check_branch
    %28 = sbr.rel (0) target = $region29
  $region28: #{net_forward.1} parent=0 // pred_region
    _
  $region29: #{net_forward.1} parent=0 // pred_fallthru
    _
  // Predicated region
  $region30: #{net_forward.1} parent=0 // pred_check
    _
  $region31: #{net_forward.1} parent=0 // pred_check_branch
    %30 = sbr.rel (0) target = $region33
  $region32: #{net_forward.1} parent=0 // pred_region
    _
  $region33: #{net_forward.1} parent=0 // pred_fallthru
    _
  // Predicated region
  $region34: #{net_forward.1} parent=0 // pred_check
    _
  $region35: #{net_forward.1} parent=0 // pred_check_branch
    %32 = sbr.rel (0) target = $region37
  $region36: #{net_forward.1} parent=0 // pred_region
    _
  $region37: #{net_forward.1} parent=0 // pred_fallthru
    _
  // Predicated region
  $region38: #{net_forward.1} parent=0 // pred_check
    _
  $region39: #{net_forward.1} parent=0 // pred_check_branch
    %34 = sbr.rel (0) target = $region41
  $region40: #{net_forward.1} parent=0 // pred_region
    _
  $region41: #{net_forward.1} parent=0 // pred_fallthru
    _
  %v36 = vld [vmem:[%s0] sm:$0xff]
  %v37 = vld [vmem:[%s0 + $0x8] sm:$0xff]
  %v38 = vld [vmem:[%s0 + $0x10] sm:$0xff]
  %v39 = vld [vmem:[%s0 + $0x18] sm:$0xff]
  %v40 = vld [vmem:[%s0 + $0x20] sm:$0xff]
  %v41 = vld [vmem:[%s0 + $0x28] sm:$0xff]
  %v42 = vld [vmem:[%s0 + $0x30] sm:$0xff]
  %v43 = vld [vmem:[%s0 + $0x38] sm:$0xff]
  %v44 = vpack.c.bf16 %v37, %v36
  %v45 = vpack.c.bf16 %v39, %v38
  %v46 = vpack.c.bf16 %v41, %v40
  %v47 = vpack.c.bf16 %v43, %v42
  %v48 = vld [vmem:[%s1] sm:$0xff]
  %v49 = vld [vmem:[%s2] sm:$0x3]
  %v51 = vperm.slane %v49, 0
  %v52 = vperm.slane %v49, 1
  %v56 = vunpack.c.l.b16 %v48
  %v57 = vunpack.c.h.b16 %v48
  %v58 = vpack.c.b16 %v56, %v56
  %v59 = vpack.c.b16 %v57, %v57
  %vm60 = vcmask 64512
  %v62 = vsel %vm60, %v44, 0
  %v65 = vsel %vm60, %v45, 0
  %v68 = vsel %vm60, %v46, 0
  %v71 = vsel %vm60, %v47, 0
  %vm73 = vcmask 1043456
  %v75 = vsel %vm73, %v58, 0
  %v78 = vsel %vm73, %v59, 0
  %80 = vmatpush.bf16.msra.mxu0 0
  %81 = vmatpush.bf16.msra.mxu0 0
  %82 = vmatpush.bf16.msra.mxu0 0
  %83 = vmatpush.bf16.msra.mxu0 0
  %84 = vmatpush.bf16.msra.mxu0 0
  %85 = vmatpush.bf16.msra.mxu0 0
  %86 = vmatpush.bf16.msra.mxu0 0
  %87 = vmatpush.bf16.msra.mxu0 %v75
  %88 = vmatmul.bf16.gmra.mxu0 %v62
  %v89 = vpop.f32.mrf.mxu0
  %v90 = vadd.f32 %v51, %v89
  %v91 = vpop.f32.mrf.mxu0
  %v92 = vadd.f32 %v51, %v91
  %93 = vmatmul.bf16.gmra.mxu0 %v65
  %v94 = vpop.f32.mrf.mxu0
  %v95 = vadd.f32 %v51, %v94
  %v96 = vpop.f32.mrf.mxu0
  %v97 = vadd.f32 %v51, %v96
  %98 = vmatmul.bf16.gmra.mxu0 %v68
  %v99 = vpop.f32.mrf.mxu0
  %v100 = vadd.f32 %v51, %v99
  %v101 = vpop.f32.mrf.mxu0
  %v102 = vadd.f32 %v51, %v101
  %103 = vmatmul.bf16.gmra.mxu0 %v71
  %v104 = vpop.f32.mrf.mxu0
  %v105 = vadd.f32 %v51, %v104
  %v106 = vpop.f32.mrf.mxu0
  %v107 = vadd.f32 %v51, %v106
  %108 = vdwg.mxu0
  %109 = vmatpush.bf16.msra.mxu0 0
  %110 = vmatpush.bf16.msra.mxu0 0
  %111 = vmatpush.bf16.msra.mxu0 0
  %112 = vmatpush.bf16.msra.mxu0 0
  %113 = vmatpush.bf16.msra.mxu0 0
  %114 = vmatpush.bf16.msra.mxu0 0
  %115 = vmatpush.bf16.msra.mxu0 0
  %116 = vmatpush.bf16.msra.mxu0 %v78
  %117 = vmatmul.bf16.gmra.mxu0 %v62
  %v118 = vpop.f32.mrf.mxu0
  %v119 = vadd.f32 %v52, %v118
  %v120 = vpop.f32.mrf.mxu0
  %v121 = vadd.f32 %v52, %v120
  %122 = vmatmul.bf16.gmra.mxu0 %v65
  %v123 = vpop.f32.mrf.mxu0
  %v124 = vadd.f32 %v52, %v123
  %v125 = vpop.f32.mrf.mxu0
  %v126 = vadd.f32 %v52, %v125
  %127 = vmatmul.bf16.gmra.mxu0 %v68
  %v128 = vpop.f32.mrf.mxu0
  %v129 = vadd.f32 %v52, %v128
  %v130 = vpop.f32.mrf.mxu0
  %v131 = vadd.f32 %v52, %v130
  %132 = vmatmul.bf16.gmra.mxu0 %v71
  %v133 = vpop.f32.mrf.mxu0
  %v134 = vadd.f32 %v52, %v133
  %v135 = vpop.f32.mrf.mxu0
  %v136 = vadd.f32 %v52, %v135
  %137 = vdwg.mxu0
  %138 = vst [vmem:[#allocation2] sm:$0xff] %v90
  %139 = vst [vmem:[#allocation2 + $0x8] sm:$0xff] %v119
  %140 = vst [vmem:[#allocation2 + $0x10] sm:$0xff] %v92
  %141 = vst [vmem:[#allocation2 + $0x18] sm:$0xff] %v121
  %142 = vst [vmem:[#allocation2 + $0x20] sm:$0xff] %v95
  %143 = vst [vmem:[#allocation2 + $0x28] sm:$0xff] %v124
  %144 = vst [vmem:[#allocation2 + $0x30] sm:$0xff] %v97
  %145 = vst [vmem:[#allocation2 + $0x38] sm:$0xff] %v126
  %146 = vst [vmem:[#allocation2 + $0x40] sm:$0xff] %v100
  %147 = vst [vmem:[#allocation2 + $0x48] sm:$0xff] %v129
  %148 = vst [vmem:[#allocation2 + $0x50] sm:$0xff] %v102
  %149 = vst [vmem:[#allocation2 + $0x58] sm:$0xff] %v131
  %150 = vst [vmem:[#allocation2 + $0x60] sm:$0xff] %v105
  %151 = vst [vmem:[#allocation2 + $0x68] sm:$0xff] %v134
  %152 = vst [vmem:[#allocation2 + $0x70] sm:$0xff] %v107
  %153 = vst [vmem:[#allocation2 + $0x78] sm:$0xff] %v136
  %v154 = vld [vmem:[%s3] sm:$0xff]
  %v155 = vld [vmem:[%s3 + $0x8] sm:$0xff]
  %v156 = vld [vmem:[%s3 + $0x10] sm:$0xff]
  %v157 = vld [vmem:[%s3 + $0x18] sm:$0xff]
  %v158 = vld [vmem:[%s3 + $0x20] sm:$0xff]
  %v159 = vld [vmem:[%s3 + $0x28] sm:$0xff]
  %v160 = vld [vmem:[%s3 + $0x30] sm:$0xff]
  %v161 = vld [vmem:[%s3 + $0x38] sm:$0xff]
  %v162 = vld [vmem:[#allocation2] sm:$0xff]
  %v163 = vld [vmem:[#allocation2 + $0x8] sm:$0xff]
  %v172 = vunpack.c.l.b16 %v154
  %v173 = vunpack.c.h.b16 %v154
  %v174 = vunpack.c.l.b16 %v155
  %v175 = vunpack.c.h.b16 %v155
  %v176 = vunpack.c.l.b16 %v156
  %v177 = vunpack.c.h.b16 %v156
  %v178 = vunpack.c.l.b16 %v157
  %v179 = vunpack.c.h.b16 %v157
  %v180 = vunpack.c.l.b16 %v158
  %v181 = vunpack.c.h.b16 %v158
  %v182 = vunpack.c.l.b16 %v159
  %v183 = vunpack.c.h.b16 %v159
  %v184 = vunpack.c.l.b16 %v160
  %v185 = vunpack.c.h.b16 %v160
  %v186 = vunpack.c.l.b16 %v161
  %v187 = vunpack.c.h.b16 %v161
  %v188 = vpack.c.b16 %v174, %v172
  %v189 = vpack.c.b16 %v175, %v173
  %v190 = vpack.c.b16 %v178, %v176
  %v191 = vpack.c.b16 %v179, %v177
  %v192 = vpack.c.b16 %v182, %v180
  %v193 = vpack.c.b16 %v183, %v181
  %v194 = vpack.c.b16 %v186, %v184
  %v195 = vpack.c.b16 %v187, %v185
  %vm204 = vcmask 523264
  %v206 = vsel %vm204, 0, 0
  %208 = vmatpush.bf16.msra.mxu0 0
  %209 = vmatpush.bf16.msra.mxu0 0
  %210 = vmatpush.bf16.msra.mxu0 0
  %211 = vmatpush.bf16.msra.mxu0 0
  %212 = vmatpush.bf16.msra.mxu0 %v194
  %213 = vmatpush.bf16.msra.mxu0 %v192
  %214 = vmatpush.bf16.msra.mxu0 %v190
  %215 = vmatpush.bf16.msra.mxu0 %v188
  %216 = vmatmul.bf16.gmra.mxu0 %v206
  %v217 = vpop.f32.mrf.mxu0
  %v218 = vadd.f32 0.0, %v217
  %v219 = vpop.f32.mrf.mxu0
  %220 = vdwg.mxu0
  %221 = vmatpush.bf16.msra.mxu0 0
  %222 = vmatpush.bf16.msra.mxu0 0
  %223 = vmatpush.bf16.msra.mxu0 0
  %224 = vmatpush.bf16.msra.mxu0 0
  %225 = vmatpush.bf16.msra.mxu0 %v195
  %226 = vmatpush.bf16.msra.mxu0 %v193
  %227 = vmatpush.bf16.msra.mxu0 %v191
  %228 = vmatpush.bf16.msra.mxu0 %v189
  %229 = vmatmul.bf16.gmra.mxu0 %v206
  %v230 = vpop.f32.mrf.mxu0
  %v231 = vadd.f32 0.0, %v230
  %v232 = vpop.f32.mrf.mxu0
  %233 = vdwg.mxu0
  %v234 = vadd.f32 %v162, %v218
  %v235 = vadd.f32 %v163, %v231
  %v236 = vsub.f32 0.0, %v234
  %v237 = vsub.f32 0.0, %v235
  %v238 = vmul.f32 %v236, 1.442695
  %v239 = vpow.pop %v238
  %v240 = vmul.f32 %v237, 1.442695
  %v241 = vpow.pop %v240
  %v242 = vadd.f32 %v239, 1.0
  %v243 = vadd.f32 %v241, 1.0
  %v244 = vrcp.pop %v242
  %v245 = vrcp.pop %v243
  %v246 = vtanh.pop %v235
  %v247 = vmul.f32 %v244, 0.0
  %249 = vrot.lane.b32.xlu0 %v246, 64
  %v250 = vpop.permute.xlu0 %249
  %v252 = vmul.f32 %v244, %v250
  %254 = vrot.lane.b32.xlu0 %v252, 64
  %v255 = vpop.permute.xlu0 %254
  %v257 = vadd.f32 %v247, %v255
  %v258 = vtanh.pop %v257
  %260 = vrot.lane.b32.xlu0 %v258, 64
  %v261 = vpop.permute.xlu0 %260
  %v263 = vmul.f32 %v245, %v261
  %v264 = vld [vmem:[#allocation2 + $0x10] sm:$0xff]
  %v265 = vld [vmem:[#allocation2 + $0x18] sm:$0xff]
  %v266 = vpack.c.bf16 %v263, %v263
  %v268 = vsel %vm204, %v266, 0
  %270 = vmatpush.bf16.msra.mxu0 0
  %271 = vmatpush.bf16.msra.mxu0 0
  %272 = vmatpush.bf16.msra.mxu0 0
  %273 = vmatpush.bf16.msra.mxu0 0
  %274 = vmatpush.bf16.msra.mxu0 %v194
  %275 = vmatpush.bf16.msra.mxu0 %v192
  %276 = vmatpush.bf16.msra.mxu0 %v190
  %277 = vmatpush.bf16.msra.mxu0 %v188
  %278 = vmatmul.bf16.gmra.mxu0 %v268
  %v279 = vpop.f32.mrf.mxu0
  %v280 = vadd.f32 0.0, %v279
  %v281 = vpop.f32.mrf.mxu0
  %282 = vdwg.mxu0
  %283 = vmatpush.bf16.msra.mxu0 0
  %284 = vmatpush.bf16.msra.mxu0 0
  %285 = vmatpush.bf16.msra.mxu0 0
  %286 = vmatpush.bf16.msra.mxu0 0
  %287 = vmatpush.bf16.msra.mxu0 %v195
  %288 = vmatpush.bf16.msra.mxu0 %v193
  %289 = vmatpush.bf16.msra.mxu0 %v191
  %290 = vmatpush.bf16.msra.mxu0 %v189
  %291 = vmatmul.bf16.gmra.mxu0 %v268
  %v292 = vpop.f32.mrf.mxu0
  %v293 = vadd.f32 0.0, %v292
  %v294 = vpop.f32.mrf.mxu0
  %295 = vdwg.mxu0
  %v296 = vadd.f32 %v264, %v280
  %v297 = vadd.f32 %v265, %v293
  %v298 = vsub.f32 0.0, %v296
  %v299 = vsub.f32 0.0, %v297
  %v300 = vmul.f32 %v298, 1.442695
  %v301 = vpow.pop %v300
  %v302 = vmul.f32 %v299, 1.442695
  %v303 = vpow.pop %v302
  %v304 = vadd.f32 %v301, 1.0
  %v305 = vadd.f32 %v303, 1.0
  %v306 = vrcp.pop %v304
  %v307 = vrcp.pop %v305
  %v308 = vtanh.pop %v297
  %v309 = vmul.f32 %v306, %v257
  %311 = vrot.lane.b32.xlu0 %v308, 64
  %v312 = vpop.permute.xlu0 %311
  %v314 = vmul.f32 %v306, %v312
  %316 = vrot.lane.b32.xlu0 %v314, 64
  %v317 = vpop.permute.xlu0 %316
  %v319 = vadd.f32 %v309, %v317
  %v320 = vtanh.pop %v319
  %322 = vrot.lane.b32.xlu0 %v320, 64
  %v323 = vpop.permute.xlu0 %322
  %v325 = vmul.f32 %v307, %v323
  %v326 = vld [vmem:[#allocation2 + $0x20] sm:$0xff]
  %v327 = vld [vmem:[#allocation2 + $0x28] sm:$0xff]
  %v328 = vpack.c.bf16 %v325, %v325
  %v330 = vsel %vm204, %v328, 0
  %332 = vmatpush.bf16.msra.mxu0 0
  %333 = vmatpush.bf16.msra.mxu0 0
  %334 = vmatpush.bf16.msra.mxu0 0
  %335 = vmatpush.bf16.msra.mxu0 0
  %336 = vmatpush.bf16.msra.mxu0 %v194
  %337 = vmatpush.bf16.msra.mxu0 %v192
  %338 = vmatpush.bf16.msra.mxu0 %v190
  %339 = vmatpush.bf16.msra.mxu0 %v188
  %340 = vmatmul.bf16.gmra.mxu0 %v330
  %v341 = vpop.f32.mrf.mxu0
  %v342 = vadd.f32 0.0, %v341
  %v343 = vpop.f32.mrf.mxu0
  %344 = vdwg.mxu0
  %345 = vmatpush.bf16.msra.mxu0 0
  %346 = vmatpush.bf16.msra.mxu0 0
  %347 = vmatpush.bf16.msra.mxu0 0
  %348 = vmatpush.bf16.msra.mxu0 0
  %349 = vmatpush.bf16.msra.mxu0 %v195
  %350 = vmatpush.bf16.msra.mxu0 %v193
  %351 = vmatpush.bf16.msra.mxu0 %v191
  %352 = vmatpush.bf16.msra.mxu0 %v189
  %353 = vmatmul.bf16.gmra.mxu0 %v330
  %v354 = vpop.f32.mrf.mxu0
  %v355 = vadd.f32 0.0, %v354
  %v356 = vpop.f32.mrf.mxu0
  %357 = vdwg.mxu0
  %v358 = vadd.f32 %v326, %v342
  %v359 = vadd.f32 %v327, %v355
  %v360 = vsub.f32 0.0, %v358
  %v361 = vsub.f32 0.0, %v359
  %v362 = vmul.f32 %v360, 1.442695
  %v363 = vpow.pop %v362
  %v364 = vmul.f32 %v361, 1.442695
  %v365 = vpow.pop %v364
  %v366 = vadd.f32 %v363, 1.0
  %v367 = vadd.f32 %v365, 1.0
  %v368 = vrcp.pop %v366
  %v369 = vrcp.pop %v367
  %v370 = vtanh.pop %v359
  %v371 = vmul.f32 %v368, %v319
  %373 = vrot.lane.b32.xlu0 %v370, 64
  %v374 = vpop.permute.xlu0 %373
  %v376 = vmul.f32 %v368, %v374
  %378 = vrot.lane.b32.xlu0 %v376, 64
  %v379 = vpop.permute.xlu0 %378
  %v381 = vadd.f32 %v371, %v379
  %v382 = vtanh.pop %v381
  %384 = vrot.lane.b32.xlu0 %v382, 64
  %v385 = vpop.permute.xlu0 %384
  %v387 = vmul.f32 %v369, %v385
  %v388 = vld [vmem:[#allocation2 + $0x30] sm:$0xff]
  %v389 = vld [vmem:[#allocation2 + $0x38] sm:$0xff]
  %v390 = vpack.c.bf16 %v387, %v387
  %v392 = vsel %vm204, %v390, 0
  %394 = vmatpush.bf16.msra.mxu0 0
  %395 = vmatpush.bf16.msra.mxu0 0
  %396 = vmatpush.bf16.msra.mxu0 0
  %397 = vmatpush.bf16.msra.mxu0 0
  %398 = vmatpush.bf16.msra.mxu0 %v194
  %399 = vmatpush.bf16.msra.mxu0 %v192
  %400 = vmatpush.bf16.msra.mxu0 %v190
  %401 = vmatpush.bf16.msra.mxu0 %v188
  %402 = vmatmul.bf16.gmra.mxu0 %v392
  %v403 = vpop.f32.mrf.mxu0
  %v404 = vadd.f32 0.0, %v403
  %v405 = vpop.f32.mrf.mxu0
  %406 = vdwg.mxu0
  %407 = vmatpush.bf16.msra.mxu0 0
  %408 = vmatpush.bf16.msra.mxu0 0
  %409 = vmatpush.bf16.msra.mxu0 0
  %410 = vmatpush.bf16.msra.mxu0 0
  %411 = vmatpush.bf16.msra.mxu0 %v195
  %412 = vmatpush.bf16.msra.mxu0 %v193
  %413 = vmatpush.bf16.msra.mxu0 %v191
  %414 = vmatpush.bf16.msra.mxu0 %v189
  %415 = vmatmul.bf16.gmra.mxu0 %v392
  %v416 = vpop.f32.mrf.mxu0
  %v417 = vadd.f32 0.0, %v416
  %v418 = vpop.f32.mrf.mxu0
  %419 = vdwg.mxu0
  %v420 = vadd.f32 %v388, %v404
  %v421 = vadd.f32 %v389, %v417
  %v422 = vsub.f32 0.0, %v420
  %v423 = vsub.f32 0.0, %v421
  %v424 = vmul.f32 %v422, 1.442695
  %v425 = vpow.pop %v424
  %v426 = vmul.f32 %v423, 1.442695
  %v427 = vpow.pop %v426
  %v428 = vadd.f32 %v425, 1.0
  %v429 = vadd.f32 %v427, 1.0
  %v430 = vrcp.pop %v428
  %v431 = vrcp.pop %v429
  %v432 = vtanh.pop %v421
  %v433 = vmul.f32 %v430, %v381
  %435 = vrot.lane.b32.xlu0 %v432, 64
  %v436 = vpop.permute.xlu0 %435
  %v438 = vmul.f32 %v430, %v436
  %440 = vrot.lane.b32.xlu0 %v438, 64
  %v441 = vpop.permute.xlu0 %440
  %v443 = vadd.f32 %v433, %v441
  %v444 = vtanh.pop %v443
  %446 = vrot.lane.b32.xlu0 %v444, 64
  %v447 = vpop.permute.xlu0 %446
  %v449 = vmul.f32 %v431, %v447
  %v450 = vld [vmem:[#allocation2 + $0x40] sm:$0xff]
  %v451 = vld [vmem:[#allocation2 + $0x48] sm:$0xff]
  %v452 = vpack.c.bf16 %v449, %v449
  %v454 = vsel %vm204, %v452, 0
  %456 = vmatpush.bf16.msra.mxu0 0
  %457 = vmatpush.bf16.msra.mxu0 0
  %458 = vmatpush.bf16.msra.mxu0 0
  %459 = vmatpush.bf16.msra.mxu0 0
  %460 = vmatpush.bf16.msra.mxu0 %v194
  %461 = vmatpush.bf16.msra.mxu0 %v192
  %462 = vmatpush.bf16.msra.mxu0 %v190
  %463 = vmatpush.bf16.msra.mxu0 %v188
  %464 = vmatmul.bf16.gmra.mxu0 %v454
  %v465 = vpop.f32.mrf.mxu0
  %v466 = vadd.f32 0.0, %v465
  %v467 = vpop.f32.mrf.mxu0
  %468 = vdwg.mxu0
  %469 = vmatpush.bf16.msra.mxu0 0
  %470 = vmatpush.bf16.msra.mxu0 0
  %471 = vmatpush.bf16.msra.mxu0 0
  %472 = vmatpush.bf16.msra.mxu0 0
  %473 = vmatpush.bf16.msra.mxu0 %v195
  %474 = vmatpush.bf16.msra.mxu0 %v193
  %475 = vmatpush.bf16.msra.mxu0 %v191
  %476 = vmatpush.bf16.msra.mxu0 %v189
  %477 = vmatmul.bf16.gmra.mxu0 %v454
  %v478 = vpop.f32.mrf.mxu0
  %v479 = vadd.f32 0.0, %v478
  %v480 = vpop.f32.mrf.mxu0
  %481 = vdwg.mxu0
  %v482 = vadd.f32 %v450, %v466
  %v483 = vadd.f32 %v451, %v479
  %v484 = vsub.f32 0.0, %v482
  %v485 = vsub.f32 0.0, %v483
  %v486 = vmul.f32 %v484, 1.442695
  %v487 = vpow.pop %v486
  %v488 = vmul.f32 %v485, 1.442695
  %v489 = vpow.pop %v488
  %v490 = vadd.f32 %v487, 1.0
  %v491 = vadd.f32 %v489, 1.0
  %v492 = vrcp.pop %v490
  %v493 = vrcp.pop %v491
  %v494 = vtanh.pop %v483
  %v495 = vmul.f32 %v492, %v443
  %497 = vrot.lane.b32.xlu0 %v494, 64
  %v498 = vpop.permute.xlu0 %497
  %v500 = vmul.f32 %v492, %v498
  %502 = vrot.lane.b32.xlu0 %v500, 64
  %v503 = vpop.permute.xlu0 %502
  %v505 = vadd.f32 %v495, %v503
  %v506 = vtanh.pop %v505
  %508 = vrot.lane.b32.xlu0 %v506, 64
  %v509 = vpop.permute.xlu0 %508
  %v511 = vmul.f32 %v493, %v509
  %v512 = vld [vmem:[#allocation2 + $0x50] sm:$0xff]
  %v513 = vld [vmem:[#allocation2 + $0x58] sm:$0xff]
  %v514 = vpack.c.bf16 %v511, %v511
  %v516 = vsel %vm204, %v514, 0
  %518 = vmatpush.bf16.msra.mxu0 0
  %519 = vmatpush.bf16.msra.mxu0 0
  %520 = vmatpush.bf16.msra.mxu0 0
  %521 = vmatpush.bf16.msra.mxu0 0
  %522 = vmatpush.bf16.msra.mxu0 %v194
  %523 = vmatpush.bf16.msra.mxu0 %v192
  %524 = vmatpush.bf16.msra.mxu0 %v190
  %525 = vmatpush.bf16.msra.mxu0 %v188
  %526 = vmatmul.bf16.gmra.mxu0 %v516
  %v527 = vpop.f32.mrf.mxu0
  %v528 = vadd.f32 0.0, %v527
  %v529 = vpop.f32.mrf.mxu0
  %530 = vdwg.mxu0
  %531 = vmatpush.bf16.msra.mxu0 0
  %532 = vmatpush.bf16.msra.mxu0 0
  %533 = vmatpush.bf16.msra.mxu0 0
  %534 = vmatpush.bf16.msra.mxu0 0
  %535 = vmatpush.bf16.msra.mxu0 %v195
  %536 = vmatpush.bf16.msra.mxu0 %v193
  %537 = vmatpush.bf16.msra.mxu0 %v191
  %538 = vmatpush.bf16.msra.mxu0 %v189
  %539 = vmatmul.bf16.gmra.mxu0 %v516
  %v540 = vpop.f32.mrf.mxu0
  %v541 = vadd.f32 0.0, %v540
  %v542 = vpop.f32.mrf.mxu0
  %543 = vdwg.mxu0
  %v544 = vadd.f32 %v512, %v528
  %v545 = vadd.f32 %v513, %v541
  %v546 = vsub.f32 0.0, %v544
  %v547 = vsub.f32 0.0, %v545
  %v548 = vmul.f32 %v546, 1.442695
  %v549 = vpow.pop %v548
  %v550 = vmul.f32 %v547, 1.442695
  %v551 = vpow.pop %v550
  %v552 = vadd.f32 %v549, 1.0
  %v553 = vadd.f32 %v551, 1.0
  %v554 = vrcp.pop %v552
  %v555 = vrcp.pop %v553
  %v556 = vtanh.pop %v545
  %v557 = vmul.f32 %v554, %v505
  %559 = vrot.lane.b32.xlu0 %v556, 64
  %v560 = vpop.permute.xlu0 %559
  %v562 = vmul.f32 %v554, %v560
  %564 = vrot.lane.b32.xlu0 %v562, 64
  %v565 = vpop.permute.xlu0 %564
  %v567 = vadd.f32 %v557, %v565
  %v568 = vtanh.pop %v567
  %570 = vrot.lane.b32.xlu0 %v568, 64
  %v571 = vpop.permute.xlu0 %570
  %v573 = vmul.f32 %v555, %v571
  %v574 = vld [vmem:[#allocation2 + $0x60] sm:$0xff]
  %v575 = vld [vmem:[#allocation2 + $0x68] sm:$0xff]
  %v576 = vpack.c.bf16 %v573, %v573
  %v578 = vsel %vm204, %v576, 0
  %580 = vmatpush.bf16.msra.mxu0 0
  %581 = vmatpush.bf16.msra.mxu0 0
  %582 = vmatpush.bf16.msra.mxu0 0
  %583 = vmatpush.bf16.msra.mxu0 0
  %584 = vmatpush.bf16.msra.mxu0 %v194
  %585 = vmatpush.bf16.msra.mxu0 %v192
  %586 = vmatpush.bf16.msra.mxu0 %v190
  %587 = vmatpush.bf16.msra.mxu0 %v188
  %588 = vmatmul.bf16.gmra.mxu0 %v578
  %v589 = vpop.f32.mrf.mxu0
  %v590 = vadd.f32 0.0, %v589
  %v591 = vpop.f32.mrf.mxu0
  %592 = vdwg.mxu0
  %593 = vmatpush.bf16.msra.mxu0 0
  %594 = vmatpush.bf16.msra.mxu0 0
  %595 = vmatpush.bf16.msra.mxu0 0
  %596 = vmatpush.bf16.msra.mxu0 0
  %597 = vmatpush.bf16.msra.mxu0 %v195
  %598 = vmatpush.bf16.msra.mxu0 %v193
  %599 = vmatpush.bf16.msra.mxu0 %v191
  %600 = vmatpush.bf16.msra.mxu0 %v189
  %601 = vmatmul.bf16.gmra.mxu0 %v578
  %v602 = vpop.f32.mrf.mxu0
  %v603 = vadd.f32 0.0, %v602
  %v604 = vpop.f32.mrf.mxu0
  %605 = vdwg.mxu0
  %v606 = vadd.f32 %v574, %v590
  %v607 = vadd.f32 %v575, %v603
  %v608 = vsub.f32 0.0, %v606
  %v609 = vsub.f32 0.0, %v607
  %v610 = vmul.f32 %v608, 1.442695
  %v611 = vpow.pop %v610
  %v612 = vmul.f32 %v609, 1.442695
  %v613 = vpow.pop %v612
  %v614 = vadd.f32 %v611, 1.0
  %v615 = vadd.f32 %v613, 1.0
  %v616 = vrcp.pop %v614
  %v617 = vrcp.pop %v615
  %v618 = vtanh.pop %v607
  %v619 = vmul.f32 %v616, %v567
  %621 = vrot.lane.b32.xlu0 %v618, 64
  %v622 = vpop.permute.xlu0 %621
  %v624 = vmul.f32 %v616, %v622
  %626 = vrot.lane.b32.xlu0 %v624, 64
  %v627 = vpop.permute.xlu0 %626
  %v629 = vadd.f32 %v619, %v627
  %v630 = vtanh.pop %v629
  %632 = vrot.lane.b32.xlu0 %v630, 64
  %v633 = vpop.permute.xlu0 %632
  %v635 = vmul.f32 %v617, %v633
  %v636 = vld [vmem:[#allocation2 + $0x70] sm:$0xff]
  %v637 = vld [vmem:[#allocation2 + $0x78] sm:$0xff]
  %v638 = vpack.c.bf16 %v635, %v635
  %v640 = vsel %vm204, %v638, 0
  %642 = vmatpush.bf16.msra.mxu0 0
  %643 = vmatpush.bf16.msra.mxu0 0
  %644 = vmatpush.bf16.msra.mxu0 0
  %645 = vmatpush.bf16.msra.mxu0 0
  %646 = vmatpush.bf16.msra.mxu0 %v194
  %647 = vmatpush.bf16.msra.mxu0 %v192
  %648 = vmatpush.bf16.msra.mxu0 %v190
  %649 = vmatpush.bf16.msra.mxu0 %v188
  %650 = vmatmul.bf16.gmra.mxu0 %v640
  %v651 = vpop.f32.mrf.mxu0
  %v652 = vadd.f32 0.0, %v651
  %v653 = vpop.f32.mrf.mxu0
  %654 = vdwg.mxu0
  %655 = vmatpush.bf16.msra.mxu0 0
  %656 = vmatpush.bf16.msra.mxu0 0
  %657 = vmatpush.bf16.msra.mxu0 0
  %658 = vmatpush.bf16.msra.mxu0 0
  %659 = vmatpush.bf16.msra.mxu0 %v195
  %660 = vmatpush.bf16.msra.mxu0 %v193
  %661 = vmatpush.bf16.msra.mxu0 %v191
  %662 = vmatpush.bf16.msra.mxu0 %v189
  %663 = vmatmul.bf16.gmra.mxu0 %v640
  %v664 = vpop.f32.mrf.mxu0
  %v665 = vadd.f32 0.0, %v664
  %v666 = vpop.f32.mrf.mxu0
  %667 = vdwg.mxu0
  %v668 = vadd.f32 %v636, %v652
  %v669 = vadd.f32 %v637, %v665
  %v670 = vsub.f32 0.0, %v668
  %v671 = vsub.f32 0.0, %v669
  %v672 = vmul.f32 %v670, 1.442695
  %v673 = vpow.pop %v672
  %v674 = vmul.f32 %v671, 1.442695
  %v675 = vpow.pop %v674
  %v676 = vadd.f32 %v673, 1.0
  %v677 = vadd.f32 %v675, 1.0
  %v678 = vrcp.pop %v676
  %v679 = vrcp.pop %v677
  %v680 = vtanh.pop %v669
  %v681 = vmul.f32 %v678, %v629
  %683 = vrot.lane.b32.xlu0 %v680, 64
  %v684 = vpop.permute.xlu0 %683
  %v686 = vmul.f32 %v678, %v684
  %688 = vrot.lane.b32.xlu0 %v686, 64
  %v689 = vpop.permute.xlu0 %688
  %v691 = vadd.f32 %v681, %v689
  %v692 = vtanh.pop %v691
  %694 = vrot.lane.b32.xlu0 %v692, 64
  %v695 = vpop.permute.xlu0 %694
  %v697 = vmul.f32 %v679, %v695
  %v698 = vmax.f32 %v697, 0.0
  %v699 = vpack.c.bf16 %v698, %v698
  %v700 = vld [vmem:[%s4] sm:$0xf]
  %v701 = vld [vmem:[%s4 + $0x4] sm:$0xf]
  %v702 = vld [vmem:[%s4 + $0x8] sm:$0xf]
  %v703 = vld [vmem:[%s4 + $0xc] sm:$0xf]
  %v704 = vld [vmem:[%s4 + $0x10] sm:$0xf]
  %v705 = vld [vmem:[%s4 + $0x14] sm:$0xf]
  %v706 = vld [vmem:[%s4 + $0x18] sm:$0xf]
  %v707 = vld [vmem:[%s4 + $0x1c] sm:$0xf]
  %v708 = vld [vmem:[%s5] sm:$0x1]
  %v710 = vperm.slane %v708, 0
  %v720 = vunpack.c.l.b16 %v700
  %v721 = vunpack.c.l.b16 %v701
  %v722 = vunpack.c.l.b16 %v702
  %v723 = vunpack.c.l.b16 %v703
  %v724 = vunpack.c.l.b16 %v704
  %v725 = vunpack.c.l.b16 %v705
  %v726 = vunpack.c.l.b16 %v706
  %v727 = vunpack.c.l.b16 %v707
  %v728 = vpack.c.b16 %v721, %v720
  %v729 = vpack.c.b16 %v723, %v722
  %v730 = vpack.c.b16 %v725, %v724
  %v731 = vpack.c.b16 %v727, %v726
  %v737 = vsel %vm204, %v699, 0
  %739 = vmatpush.bf16.msra.mxu0 0
  %740 = vmatpush.bf16.msra.mxu0 0
  %741 = vmatpush.bf16.msra.mxu0 0
  %742 = vmatpush.bf16.msra.mxu0 0
  %743 = vmatpush.bf16.msra.mxu0 %v731
  %744 = vmatpush.bf16.msra.mxu0 %v730
  %745 = vmatpush.bf16.msra.mxu0 %v729
  %746 = vmatpush.bf16.msra.mxu0 %v728
  %747 = vmatmul.bf16.gmra.mxu0 %v737
  %v748 = vpop.f32.mrf.mxu0
  %v749 = vadd.f32 %v710, %v748
  %v750 = vpop.f32.mrf.mxu0
  %751 = vdwg.mxu0
  %v752 = vmax.f32 %v749, 0.0
  %v753 = vpack.c.bf16 %v752, %v752
  %v754 = vld [vmem:[%s6] sm:$0xf]
  %v755 = vld [vmem:[%s6 + $0x4] sm:$0xf]
  %v756 = vld [vmem:[%s6 + $0x8] sm:$0xf]
  %v757 = vld [vmem:[%s6 + $0xc] sm:$0xf]
  %v758 = vld [vmem:[%s6 + $0x10] sm:$0xf]
  %v759 = vld [vmem:[%s6 + $0x14] sm:$0xf]
  %v760 = vld [vmem:[%s6 + $0x18] sm:$0xf]
  %v761 = vld [vmem:[%s6 + $0x1c] sm:$0xf]
  %v762 = vld [vmem:[%s7] sm:$0x1]
  %v764 = vperm.slane %v762, 0
  %v774 = vunpack.c.l.b16 %v754
  %v775 = vunpack.c.l.b16 %v755
  %v776 = vunpack.c.l.b16 %v756
  %v777 = vunpack.c.l.b16 %v757
  %v778 = vunpack.c.l.b16 %v758
  %v779 = vunpack.c.l.b16 %v759
  %v780 = vunpack.c.l.b16 %v760
  %v781 = vunpack.c.l.b16 %v761
  %v782 = vpack.c.b16 %v775, %v774
  %v783 = vpack.c.b16 %v777, %v776
  %v784 = vpack.c.b16 %v779, %v778
  %v785 = vpack.c.b16 %v781, %v780
  %v791 = vsel %vm204, %v753, 0
  %793 = vmatpush.bf16.msra.mxu0 0
  %794 = vmatpush.bf16.msra.mxu0 0
  %795 = vmatpush.bf16.msra.mxu0 0
  %796 = vmatpush.bf16.msra.mxu0 0
  %797 = vmatpush.bf16.msra.mxu0 %v785
  %798 = vmatpush.bf16.msra.mxu0 %v784
  %799 = vmatpush.bf16.msra.mxu0 %v783
  %800 = vmatpush.bf16.msra.mxu0 %v782
  %801 = vmatmul.bf16.gmra.mxu0 %v791
  %v802 = vpop.f32.mrf.mxu0
  %v803 = vadd.f32 %v764, %v802
  %v804 = vpop.f32.mrf.mxu0
  %805 = vdwg.mxu0
  %v806 = vmax.f32 %v803, 0.0
  %v807 = vpack.c.bf16 %v806, %v806
  %v808 = vld [vmem:[%s8] sm:$0xf]
  %v809 = vld [vmem:[%s8 + $0x4] sm:$0xf]
  %v810 = vld [vmem:[%s8 + $0x8] sm:$0xf]
  %v811 = vld [vmem:[%s8 + $0xc] sm:$0xf]
  %v812 = vld [vmem:[%s9] sm:$0x1]
  %v814 = vperm.slane %v812, 0
  %v820 = vunpack.c.l.b16 %v808
  %v821 = vunpack.c.l.b16 %v809
  %v822 = vunpack.c.l.b16 %v810
  %v823 = vunpack.c.l.b16 %v811
  %v824 = vpack.c.b16 %v821, %v820
  %v825 = vpack.c.b16 %v823, %v822
  %vm828 = vcmask 261120
  %v830 = vsel %vm828, %v807, 0
  %832 = vmatpush.bf16.msra.mxu0 0
  %833 = vmatpush.bf16.msra.mxu0 0
  %834 = vmatpush.bf16.msra.mxu0 0
  %835 = vmatpush.bf16.msra.mxu0 0
  %836 = vmatpush.bf16.msra.mxu0 0
  %837 = vmatpush.bf16.msra.mxu0 0
  %838 = vmatpush.bf16.msra.mxu0 %v825
  %839 = vmatpush.bf16.msra.mxu0 %v824
  %840 = vmatmul.bf16.gmra.mxu0 %v830
  %v841 = vpop.f32.mrf.mxu0
  %v842 = vadd.f32 %v814, %v841
  %v843 = vpop.f32.mrf.mxu0
  %844 = vdwg.mxu0
  %845 = vst [vmem:[%s10] sm:$0xff] %v842
  // Predicated region
  $region42: #{net_forward.1} parent=0 // pred_check
    _
  $region43: #{net_forward.1} parent=0 // pred_check_branch
    %847 = sbr.rel (0) target = $region45
  $region44: #{net_forward.1} parent=0 // pred_region
    _
  $region45: #{net_forward.1} parent=0 // pred_fallthru
    _
  // Predicated region
  $region46: #{net_forward.1} parent=0 // pred_check
    _
  $region47: #{net_forward.1} parent=0 // pred_check_branch
    %849 = sbr.rel (0) target = $region49
  $region48: #{net_forward.1} parent=0 // pred_region
    _
  $region49: #{net_forward.1} parent=0 // pred_fallthru
    _

</llo_original>
